<compile_context>
chip_gen: v7x
topology: tpu7x:2x2x1
jax: 0.10.0
libtpu: 0.0.40
codegen_flags: <defaults>
</compile_context>

<pallas_src>
import jax
import jax.numpy as jnp
from jax import lax
from jax.experimental import pallas as pl
from jax.experimental.pallas import tpu as pltpu


# --------------------------------------------------------------------------
# In-kernel helpers
# --------------------------------------------------------------------------

def _clamped_shift(f, axis, direction):
    """f shifted by +/-1 along `axis`, edge value repeated (clamped index)."""
    n = f.shape[axis]
    if direction > 0:   # f_plus[i] = f[min(i + 1, n - 1)]
        return jnp.concatenate(
            [lax.slice_in_dim(f, 1, n, axis=axis),
             lax.slice_in_dim(f, n - 1, n, axis=axis)], axis=axis)
    # f_minus[i] = f[max(i - 1, 0)]
    return jnp.concatenate(
        [lax.slice_in_dim(f, 0, 1, axis=axis),
         lax.slice_in_dim(f, 0, n - 1, axis=axis)], axis=axis)


def _central_diff(f, axis, use_roll):
    """f[i+1] - f[i-1] for interior i; edge rows/cols are patched by caller."""
    n = f.shape[axis]
    if use_roll:
        # pltpu.roll follows jnp.roll semantics: roll(f, s)[i] = f[(i - s) % n].
        f_plus = pltpu.roll(f, shift=n - 1, axis=axis)   # f[i + 1] (cyclic)
        f_minus = pltpu.roll(f, shift=1, axis=axis)      # f[i - 1] (cyclic)
    else:
        f_plus = _clamped_shift(f, axis, +1)
        f_minus = _clamped_shift(f, axis, -1)
    return f_plus - f_minus


def _edge_coeff(shape, axis, dtype):
    """torch.gradient coefficient: 1.0 at the two edges, 0.5 interior."""
    n = shape[axis]
    idx = lax.broadcasted_iota(jnp.int32, shape, axis)
    return jnp.where((idx == 0) | (idx == n - 1), 1.0, 0.5).astype(dtype)


def _edge_aware_grad(f, axis, coeff):
    """Exact torch.gradient(f, dim=axis)[0]; only used on narrow edge slabs."""
    return (_clamped_shift(f, axis, +1) - _clamped_shift(f, axis, -1)) * coeff


def _make_advection_kernel(H, W, use_roll):

    def kernel(u_ref, vx_ref, vy_ref, adv_ref):
        u = u_ref[...]        # (TK, H, W)
        vx = vx_ref[...]
        vy = vy_ref[...]
        dt = adv_ref.dtype
        tk = u.shape[0]

        # ---- interior: central differences, 0.5 folded once at the end ----
        acc = vx * _central_diff(u, 2, use_roll)                  # v_x * 2*du_x
        acc = acc + vy * _central_diff(u, 1, use_roll)            # v_y * 2*du_y
        acc = acc + u * (_central_diff(vy, 1, use_roll)
                         + _central_diff(vx, 2, use_roll))        # u*(2*dvy_y + 2*dvx_x)
        adv_ref[...] = (0.5 * acc).astype(dt)

        # ---- H-edge rows: one-sided difference along H, exact W gradient ----
        coeff_w = _edge_coeff((tk, 1, W), 2, dt)       # shared by both edge rows

        def row_patch(r_edge, r_in):
            u_e = u[:, r_edge:r_edge + 1, :]
            vx_e = vx[:, r_edge:r_edge + 1, :]
            vy_e = vy[:, r_edge:r_edge + 1, :]
            u_i = u[:, r_in:r_in + 1, :]
            vy_i = vy[:, r_in:r_in + 1, :]
            if r_edge < r_in:                          # row 0:   f[1]   - f[0]
                du_y, dvy_y = u_i - u_e, vy_i - vy_e
            else:                                      # row H-1: f[H-1] - f[H-2]
                du_y, dvy_y = u_e - u_i, vy_e - vy_i
            du_x = _edge_aware_grad(u_e, 2, coeff_w)
            dvx_x = _edge_aware_grad(vx_e, 2, coeff_w)
            adv = vx_e * du_x + vy_e * du_y + u_e * (dvy_y + dvx_x)
            adv_ref[:, r_edge:r_edge + 1, :] = adv.astype(dt)

        row_patch(0, 1)
        row_patch(H - 1, H - 2)

        # ---- W-edge cols: one-sided difference along W, exact H gradient ----
        coeff_h = _edge_coeff((tk, H, 1), 1, dt)       # shared by both edge cols

        def col_patch(c_edge, c_in):
            u_e = u[:, :, c_edge:c_edge + 1]
            vx_e = vx[:, :, c_edge:c_edge + 1]
            vy_e = vy[:, :, c_edge:c_edge + 1]
            u_i = u[:, :, c_in:c_in + 1]
            vx_i = vx[:, :, c_in:c_in + 1]
            if c_edge < c_in:                          # col 0:   f[1]   - f[0]
                du_x, dvx_x = u_i - u_e, vx_i - vx_e
            else:                                      # col W-1: f[W-1] - f[W-2]
                du_x, dvx_x = u_e - u_i, vx_e - vx_i
            du_y = _edge_aware_grad(u_e, 1, coeff_h)
            dvy_y = _edge_aware_grad(vy_e, 1, coeff_h)
            adv = vx_e * du_x + vy_e * du_y + u_e * (dvy_y + dvx_x)
            adv_ref[:, :, c_edge:c_edge + 1] = adv.astype(dt)

        col_patch(0, 1)
        col_patch(W - 1, W - 2)

    return kernel


# --------------------------------------------------------------------------
# Wrapper: generation-aware block sizing + grid construction
# --------------------------------------------------------------------------

def _vmem_budget():
    """(per-array block byte budget, scoped-VMEM limit) for the local chip."""
    try:
        cap = int(pltpu.get_tpu_info().vmem_capacity_bytes)
    except Exception:                        # pragma: no cover - be conservative
        cap = 64 * 1024 * 1024               # v7x per-TensorCore VMEM
    vmem_limit = min((cap * 3) // 4, 96 * 1024 * 1024)
    # 3 inputs + 1 output, double buffered -> 8 live block buffers, plus the
    # compiler's internal scratch for shift/roll temporaries: keep each block
    # at ~1/16 of the scoped limit (<= 4 MiB), which already sits on the ~85%
    # HBM-roofline plateau on every generation.
    block_bytes = min(vmem_limit // 16, 4 * 1024 * 1024)
    return block_bytes, vmem_limit


def _pick_tk(K, slab_bytes, block_bytes, min_steps=4):
    """K-block length: as large as the budget allows, capped so the grid keeps
    >= min_steps steps (pipeline overlap + v7x dual-TensorCore sharding)."""
    tk_fit = max(1, min(K, block_bytes // max(slab_bytes, 1)))
    tk_pipe = max(1, pl.cdiv(K, min(K, min_steps)))
    return max(1, min(tk_fit, tk_pipe))


def optim_velocity_forward(u, v_x, v_y, *, block_bytes=None, vmem_limit_bytes=None):
    """Pallas implementation of OptimVelocity.forward.

    u, v_x, v_y: (K, H, W).  Returns (advection, v_x, v_y).
    """
    K, H, W = u.shape
    if v_x.shape != u.shape or v_y.shape != u.shape:
        raise ValueError("u, v_x, v_y must share the same (K, H, W) shape")
    if H < 2 or W < 2:
        raise ValueError("torch.gradient needs >= 2 samples along H and W")

    auto_block, auto_limit = _vmem_budget()
    if block_bytes is None:
        block_bytes = auto_block
    if vmem_limit_bytes is None:
        vmem_limit_bytes = auto_limit

    itemsize = jnp.dtype(u.dtype).itemsize
    slab_bytes = H * W * itemsize
    if slab_bytes > block_bytes:
        # TODO(synk): tile H with a 1-row halo (input blocks (tk, TH+2, W),
        # output blocks (tk, TH, W)) for slabs larger than the VMEM budget.
        raise NotImplementedError(
            f"a single (1,{H},{W}) slab ({slab_bytes} B) exceeds the per-array "
            f"VMEM block budget ({block_bytes} B); H-halo tiling not implemented")

    tk = _pick_tk(K, slab_bytes, block_bytes)
    grid = pl.cdiv(K, tk)   # ragged last block is fine: the op is elementwise in K

    # pltpu.roll needs natively tiled (sublane, lane) dims; sublane packing
    # depends on dtype width (f32 -> 8, bf16 -> 16, int8/fp8 -> 32).
    sublane = 8 * max(1, 4 // itemsize)
    use_roll = (H % sublane == 0) and (W % 128 == 0)
    # TODO(synk): for lane-unaligned small W, pad W to 128 (or put K on the
    # lane axis) so output stores become unmasked lane-dense vst's.

    spec = pl.BlockSpec((tk, H, W), lambda k: (k, 0, 0))
    advection = pl.pallas_call(
        _make_advection_kernel(H, W, use_roll),
        out_shape=jax.ShapeDtypeStruct((K, H, W), u.dtype),
        grid_spec=pltpu.PrefetchScalarGridSpec(
            num_scalar_prefetch=0,
            grid=(grid,),
            in_specs=[spec, spec, spec],
            out_specs=spec,
        ),
        compiler_params=pltpu.CompilerParams(
            dimension_semantics=("parallel",),
            vmem_limit_bytes=vmem_limit_bytes,
        ),
    )(u, v_x, v_y)
    return advection, v_x, v_y


# --------------------------------------------------------------------------
# Pure-JAX reference (independent construction) + self-checks
# --------------------------------------------------------------------------

def _reference_forward(u, v_x, v_y):
    def grad(f, axis):
        n = f.shape[axis]
        fp = jnp.concatenate([lax.slice_in_dim(f, 1, n, axis=axis),
                              lax.slice_in_dim(f, n - 1, n, axis=axis)], axis)
        fm = jnp.concatenate([lax.slice_in_dim(f, 0, 1, axis=axis),
                              lax.slice_in_dim(f, 0, n - 1, axis=axis)], axis)
        idx = lax.broadcasted_iota(jnp.int32, f.shape, axis)
        coeff = jnp.where((idx == 0) | (idx == n - 1), 1.0, 0.5)
        return (fp - fm) * coeff
    du_y = grad(u, 1)
    du_x = grad(u, 2)
    return v_x * du_x + v_y * du_y + u * (grad(v_y, 1) + grad(v_x, 2))


def _check(K, H, W, key, label):
    k_u, k_vx, k_vy = jax.random.split(key, 3)
    u = jax.random.normal(k_u, (K, H, W), dtype=jnp.float32)
    v_x = jax.random.normal(k_vx, (K, H, W), dtype=jnp.float32)
    v_y = jax.random.normal(k_vy, (K, H, W), dtype=jnp.float32)

    adv, out_vx, out_vy = optim_velocity_forward(u, v_x, v_y)
    jax.block_until_ready(adv)

    ref = _reference_forward(u, v_x, v_y)
    assert adv.shape == (K, H, W), label
    if not jnp.allclose(adv, ref, atol=1e-5, rtol=1e-5):
        max_err = float(jnp.max(jnp.abs(adv - ref)))
        raise AssertionError(f"{label}: mismatch, max abs err = {max_err}")
    assert jnp.array_equal(out_vx, v_x) and jnp.array_equal(out_vy, v_y), label


if __name__ == "__main__":
    key = jax.random.PRNGKey(0)
    k1, k2, k3 = jax.random.split(key, 3)

    # Small shape matching the module spec (slice+concat fallback path).
    _check(2, 16, 16, k1, "spec-shape fallback path")
    # Lane-aligned shape exercising K-blocking (grid=4) and the pltpu.roll path.
    _check(8, 16, 256, k2, "lane-aligned roll path")
    # Prime K exercising the cdiv grid with a ragged last block.
    _check(7, 16, 128, k3, "ragged-K cdiv grid")

    print("KERNEL_OK")
</pallas_src>

<mosaic_0001>
module attributes {stable_mosaic.version = 11 : i64} {
  func.func @kernel(%arg0: i32, %arg1: memref<1x16x16xf32, #tpu.memory_space<vmem>>, %arg2: memref<1x16x16xf32, #tpu.memory_space<vmem>>, %arg3: memref<1x16x16xf32, #tpu.memory_space<vmem>>, %arg4: memref<1x16x16xf32, #tpu.memory_space<vmem>>) attributes {dimension_semantics = [#tpu.dimension_semantics<parallel>], iteration_bounds = array<i64: 2>, scalar_prefetch = 0 : i64, scratch_operands = 0 : i64, tpu.core_type = #tpu.core_type<tc>, window_params = [{transform_indices = @transform_0, window_bounds = array<i64: 1, 16, 16>}, {transform_indices = @transform_1, window_bounds = array<i64: 1, 16, 16>}, {transform_indices = @transform_2, window_bounds = array<i64: 1, 16, 16>}, {transform_indices = @transform_3, window_bounds = array<i64: 1, 16, 16>}]} {
    %c0 = arith.constant 0 : index
    %c0_0 = arith.constant 0 : index
    %c0_1 = arith.constant 0 : index
    %0 = vector.load %arg1[%c0, %c0_0, %c0_1] : memref<1x16x16xf32, #tpu.memory_space<vmem>>, vector<1x16x16xf32>
    %c0_2 = arith.constant 0 : index
    %c0_3 = arith.constant 0 : index
    %c0_4 = arith.constant 0 : index
    %1 = vector.load %arg2[%c0_2, %c0_3, %c0_4] : memref<1x16x16xf32, #tpu.memory_space<vmem>>, vector<1x16x16xf32>
    %c0_5 = arith.constant 0 : index
    %c0_6 = arith.constant 0 : index
    %c0_7 = arith.constant 0 : index
    %2 = vector.load %arg3[%c0_5, %c0_6, %c0_7] : memref<1x16x16xf32, #tpu.memory_space<vmem>>, vector<1x16x16xf32>
    %3 = vector.extract_strided_slice %0 {offsets = [0, 0, 1], sizes = [1, 16, 15], strides = [1, 1, 1]} : vector<1x16x16xf32> to vector<1x16x15xf32>
    %4 = vector.extract_strided_slice %0 {offsets = [0, 0, 15], sizes = [1, 16, 1], strides = [1, 1, 1]} : vector<1x16x16xf32> to vector<1x16x1xf32>
    %5 = tpu.concatenate %3, %4 in 2 : vector<1x16x15xf32>, vector<1x16x1xf32> -> vector<1x16x16xf32>
    %6 = vector.extract_strided_slice %0 {offsets = [0, 0, 0], sizes = [1, 16, 1], strides = [1, 1, 1]} : vector<1x16x16xf32> to vector<1x16x1xf32>
    %7 = vector.extract_strided_slice %0 {offsets = [0, 0, 0], sizes = [1, 16, 15], strides = [1, 1, 1]} : vector<1x16x16xf32> to vector<1x16x15xf32>
    %8 = tpu.concatenate %6, %7 in 2 : vector<1x16x1xf32>, vector<1x16x15xf32> -> vector<1x16x16xf32>
    %9 = arith.subf %5, %8 : vector<1x16x16xf32>
    %10 = arith.mulf %1, %9 : vector<1x16x16xf32>
    %11 = vector.extract_strided_slice %0 {offsets = [0, 1, 0], sizes = [1, 15, 16], strides = [1, 1, 1]} : vector<1x16x16xf32> to vector<1x15x16xf32>
    %12 = vector.extract_strided_slice %0 {offsets = [0, 15, 0], sizes = [1, 1, 16], strides = [1, 1, 1]} : vector<1x16x16xf32> to vector<1x1x16xf32>
    %13 = tpu.concatenate %11, %12 in 1 : vector<1x15x16xf32>, vector<1x1x16xf32> -> vector<1x16x16xf32>
    %14 = vector.extract_strided_slice %0 {offsets = [0, 0, 0], sizes = [1, 1, 16], strides = [1, 1, 1]} : vector<1x16x16xf32> to vector<1x1x16xf32>
    %15 = vector.extract_strided_slice %0 {offsets = [0, 0, 0], sizes = [1, 15, 16], strides = [1, 1, 1]} : vector<1x16x16xf32> to vector<1x15x16xf32>
    %16 = tpu.concatenate %14, %15 in 1 : vector<1x1x16xf32>, vector<1x15x16xf32> -> vector<1x16x16xf32>
    %17 = arith.subf %13, %16 : vector<1x16x16xf32>
    %18 = arith.mulf %2, %17 : vector<1x16x16xf32>
    %19 = arith.addf %10, %18 : vector<1x16x16xf32>
    %20 = vector.extract_strided_slice %2 {offsets = [0, 1, 0], sizes = [1, 15, 16], strides = [1, 1, 1]} : vector<1x16x16xf32> to vector<1x15x16xf32>
    %21 = vector.extract_strided_slice %2 {offsets = [0, 15, 0], sizes = [1, 1, 16], strides = [1, 1, 1]} : vector<1x16x16xf32> to vector<1x1x16xf32>
    %22 = tpu.concatenate %20, %21 in 1 : vector<1x15x16xf32>, vector<1x1x16xf32> -> vector<1x16x16xf32>
    %23 = vector.extract_strided_slice %2 {offsets = [0, 0, 0], sizes = [1, 1, 16], strides = [1, 1, 1]} : vector<1x16x16xf32> to vector<1x1x16xf32>
    %24 = vector.extract_strided_slice %2 {offsets = [0, 0, 0], sizes = [1, 15, 16], strides = [1, 1, 1]} : vector<1x16x16xf32> to vector<1x15x16xf32>
    %25 = tpu.concatenate %23, %24 in 1 : vector<1x1x16xf32>, vector<1x15x16xf32> -> vector<1x16x16xf32>
    %26 = arith.subf %22, %25 : vector<1x16x16xf32>
    %27 = vector.extract_strided_slice %1 {offsets = [0, 0, 1], sizes = [1, 16, 15], strides = [1, 1, 1]} : vector<1x16x16xf32> to vector<1x16x15xf32>
    %28 = vector.extract_strided_slice %1 {offsets = [0, 0, 15], sizes = [1, 16, 1], strides = [1, 1, 1]} : vector<1x16x16xf32> to vector<1x16x1xf32>
    %29 = tpu.concatenate %27, %28 in 2 : vector<1x16x15xf32>, vector<1x16x1xf32> -> vector<1x16x16xf32>
    %30 = vector.extract_strided_slice %1 {offsets = [0, 0, 0], sizes = [1, 16, 1], strides = [1, 1, 1]} : vector<1x16x16xf32> to vector<1x16x1xf32>
    %31 = vector.extract_strided_slice %1 {offsets = [0, 0, 0], sizes = [1, 16, 15], strides = [1, 1, 1]} : vector<1x16x16xf32> to vector<1x16x15xf32>
    %32 = tpu.concatenate %30, %31 in 2 : vector<1x16x1xf32>, vector<1x16x15xf32> -> vector<1x16x16xf32>
    %33 = arith.subf %29, %32 : vector<1x16x16xf32>
    %34 = arith.addf %26, %33 : vector<1x16x16xf32>
    %35 = arith.mulf %0, %34 : vector<1x16x16xf32>
    %36 = arith.addf %19, %35 : vector<1x16x16xf32>
    %cst = arith.constant 5.000000e-01 : f32
    %37 = vector.broadcast %cst : f32 to vector<1x16x16xf32>
    %38 = arith.mulf %37, %36 : vector<1x16x16xf32>
    %c0_8 = arith.constant 0 : index
    %c0_9 = arith.constant 0 : index
    %c0_10 = arith.constant 0 : index
    %39 = vector.load %arg4[%c0_8, %c0_9, %c0_10] : memref<1x16x16xf32, #tpu.memory_space<vmem>>, vector<1x16x16xf32>
    tpu.vector_store %arg4[%c0_8, %c0_9, %c0_10], %38 {strides = array<i32>} : memref<1x16x16xf32, #tpu.memory_space<vmem>>, vector<1x16x16xf32>,
    %40 = tpu.iota {dimensions = array<i32: 2>} : vector<1x1x16xi32>
    %c0_i32 = arith.constant 0 : i32
    %41 = vector.broadcast %c0_i32 : i32 to vector<1x1x16xi32>
    %42 = arith.cmpi eq, %40, %41 : vector<1x1x16xi32>
    %c15_i32 = arith.constant 15 : i32
    %43 = vector.broadcast %c15_i32 : i32 to vector<1x1x16xi32>
    %44 = arith.cmpi eq, %40, %43 : vector<1x1x16xi32>
    %45 = arith.ori %42, %44 : vector<1x1x16xi1>
    %cst_11 = arith.constant 1.000000e+00 : f32
    %cst_12 = arith.constant 5.000000e-01 : f32
    %46 = vector.broadcast %cst_11 : f32 to vector<1x1x16xf32>
    %47 = vector.broadcast %cst_12 : f32 to vector<1x1x16xf32>
    %48 = arith.select %45, %46, %47 : vector<1x1x16xi1>, vector<1x1x16xf32>
    %49 = vector.extract_strided_slice %0 {offsets = [0, 0, 0], sizes = [1, 1, 16], strides = [1, 1, 1]} : vector<1x16x16xf32> to vector<1x1x16xf32>
    %50 = vector.extract_strided_slice %1 {offsets = [0, 0, 0], sizes = [1, 1, 16], strides = [1, 1, 1]} : vector<1x16x16xf32> to vector<1x1x16xf32>
    %51 = vector.extract_strided_slice %2 {offsets = [0, 0, 0], sizes = [1, 1, 16], strides = [1, 1, 1]} : vector<1x16x16xf32> to vector<1x1x16xf32>
    %52 = vector.extract_strided_slice %0 {offsets = [0, 1, 0], sizes = [1, 1, 16], strides = [1, 1, 1]} : vector<1x16x16xf32> to vector<1x1x16xf32>
    %53 = vector.extract_strided_slice %2 {offsets = [0, 1, 0], sizes = [1, 1, 16], strides = [1, 1, 1]} : vector<1x16x16xf32> to vector<1x1x16xf32>
    %54 = arith.subf %52, %49 : vector<1x1x16xf32>
    %55 = arith.subf %53, %51 : vector<1x1x16xf32>
    %56 = vector.extract_strided_slice %49 {offsets = [0, 0, 1], sizes = [1, 1, 15], strides = [1, 1, 1]} : vector<1x1x16xf32> to vector<1x1x15xf32>
    %57 = vector.extract_strided_slice %49 {offsets = [0, 0, 15], sizes = [1, 1, 1], strides = [1, 1, 1]} : vector<1x1x16xf32> to vector<1x1x1xf32>
    %58 = tpu.concatenate %56, %57 in 2 : vector<1x1x15xf32>, vector<1x1x1xf32> -> vector<1x1x16xf32>
    %59 = vector.extract_strided_slice %49 {offsets = [0, 0, 0], sizes = [1, 1, 1], strides = [1, 1, 1]} : vector<1x1x16xf32> to vector<1x1x1xf32>
    %60 = vector.extract_strided_slice %49 {offsets = [0, 0, 0], sizes = [1, 1, 15], strides = [1, 1, 1]} : vector<1x1x16xf32> to vector<1x1x15xf32>
    %61 = tpu.concatenate %59, %60 in 2 : vector<1x1x1xf32>, vector<1x1x15xf32> -> vector<1x1x16xf32>
    %62 = arith.subf %58, %61 : vector<1x1x16xf32>
    %63 = arith.mulf %62, %48 : vector<1x1x16xf32>
    %64 = vector.extract_strided_slice %50 {offsets = [0, 0, 1], sizes = [1, 1, 15], strides = [1, 1, 1]} : vector<1x1x16xf32> to vector<1x1x15xf32>
    %65 = vector.extract_strided_slice %50 {offsets = [0, 0, 15], sizes = [1, 1, 1], strides = [1, 1, 1]} : vector<1x1x16xf32> to vector<1x1x1xf32>
    %66 = tpu.concatenate %64, %65 in 2 : vector<1x1x15xf32>, vector<1x1x1xf32> -> vector<1x1x16xf32>
    %67 = vector.extract_strided_slice %50 {offsets = [0, 0, 0], sizes = [1, 1, 1], strides = [1, 1, 1]} : vector<1x1x16xf32> to vector<1x1x1xf32>
    %68 = vector.extract_strided_slice %50 {offsets = [0, 0, 0], sizes = [1, 1, 15], strides = [1, 1, 1]} : vector<1x1x16xf32> to vector<1x1x15xf32>
    %69 = tpu.concatenate %67, %68 in 2 : vector<1x1x1xf32>, vector<1x1x15xf32> -> vector<1x1x16xf32>
    %70 = arith.subf %66, %69 : vector<1x1x16xf32>
    %71 = arith.mulf %70, %48 : vector<1x1x16xf32>
    %72 = arith.mulf %50, %63 : vector<1x1x16xf32>
    %73 = arith.mulf %51, %54 : vector<1x1x16xf32>
    %74 = arith.addf %72, %73 : vector<1x1x16xf32>
    %75 = arith.addf %55, %71 : vector<1x1x16xf32>
    %76 = arith.mulf %49, %75 : vector<1x1x16xf32>
    %77 = arith.addf %74, %76 : vector<1x1x16xf32>
    %c0_13 = arith.constant 0 : index
    %c0_14 = arith.constant 0 : index
    %c0_15 = arith.constant 0 : index
    %78 = vector.load %arg4[%c0_13, %c0_14, %c0_15] : memref<1x16x16xf32, #tpu.memory_space<vmem>>, vector<1x1x16xf32>
    tpu.vector_store %arg4[%c0_13, %c0_14, %c0_15], %77 {strides = array<i32>} : memref<1x16x16xf32, #tpu.memory_space<vmem>>, vector<1x1x16xf32>,
    %79 = vector.extract_strided_slice %0 {offsets = [0, 15, 0], sizes = [1, 1, 16], strides = [1, 1, 1]} : vector<1x16x16xf32> to vector<1x1x16xf32>
    %80 = vector.extract_strided_slice %1 {offsets = [0, 15, 0], sizes = [1, 1, 16], strides = [1, 1, 1]} : vector<1x16x16xf32> to vector<1x1x16xf32>
    %81 = vector.extract_strided_slice %2 {offsets = [0, 15, 0], sizes = [1, 1, 16], strides = [1, 1, 1]} : vector<1x16x16xf32> to vector<1x1x16xf32>
    %82 = vector.extract_strided_slice %0 {offsets = [0, 14, 0], sizes = [1, 1, 16], strides = [1, 1, 1]} : vector<1x16x16xf32> to vector<1x1x16xf32>
    %83 = vector.extract_strided_slice %2 {offsets = [0, 14, 0], sizes = [1, 1, 16], strides = [1, 1, 1]} : vector<1x16x16xf32> to vector<1x1x16xf32>
    %84 = arith.subf %79, %82 : vector<1x1x16xf32>
    %85 = arith.subf %81, %83 : vector<1x1x16xf32>
    %86 = vector.extract_strided_slice %79 {offsets = [0, 0, 1], sizes = [1, 1, 15], strides = [1, 1, 1]} : vector<1x1x16xf32> to vector<1x1x15xf32>
    %87 = vector.extract_strided_slice %79 {offsets = [0, 0, 15], sizes = [1, 1, 1], strides = [1, 1, 1]} : vector<1x1x16xf32> to vector<1x1x1xf32>
    %88 = tpu.concatenate %86, %87 in 2 : vector<1x1x15xf32>, vector<1x1x1xf32> -> vector<1x1x16xf32>
    %89 = vector.extract_strided_slice %79 {offsets = [0, 0, 0], sizes = [1, 1, 1], strides = [1, 1, 1]} : vector<1x1x16xf32> to vector<1x1x1xf32>
    %90 = vector.extract_strided_slice %79 {offsets = [0, 0, 0], sizes = [1, 1, 15], strides = [1, 1, 1]} : vector<1x1x16xf32> to vector<1x1x15xf32>
    %91 = tpu.concatenate %89, %90 in 2 : vector<1x1x1xf32>, vector<1x1x15xf32> -> vector<1x1x16xf32>
    %92 = arith.subf %88, %91 : vector<1x1x16xf32>
    %93 = arith.mulf %92, %48 : vector<1x1x16xf32>
    %94 = vector.extract_strided_slice %80 {offsets = [0, 0, 1], sizes = [1, 1, 15], strides = [1, 1, 1]} : vector<1x1x16xf32> to vector<1x1x15xf32>
    %95 = vector.extract_strided_slice %80 {offsets = [0, 0, 15], sizes = [1, 1, 1], strides = [1, 1, 1]} : vector<1x1x16xf32> to vector<1x1x1xf32>
    %96 = tpu.concatenate %94, %95 in 2 : vector<1x1x15xf32>, vector<1x1x1xf32> -> vector<1x1x16xf32>
    %97 = vector.extract_strided_slice %80 {offsets = [0, 0, 0], sizes = [1, 1, 1], strides = [1, 1, 1]} : vector<1x1x16xf32> to vector<1x1x1xf32>
    %98 = vector.extract_strided_slice %80 {offsets = [0, 0, 0], sizes = [1, 1, 15], strides = [1, 1, 1]} : vector<1x1x16xf32> to vector<1x1x15xf32>
    %99 = tpu.concatenate %97, %98 in 2 : vector<1x1x1xf32>, vector<1x1x15xf32> -> vector<1x1x16xf32>
    %100 = arith.subf %96, %99 : vector<1x1x16xf32>
    %101 = arith.mulf %100, %48 : vector<1x1x16xf32>
    %102 = arith.mulf %80, %93 : vector<1x1x16xf32>
    %103 = arith.mulf %81, %84 : vector<1x1x16xf32>
    %104 = arith.addf %102, %103 : vector<1x1x16xf32>
    %105 = arith.addf %85, %101 : vector<1x1x16xf32>
    %106 = arith.mulf %79, %105 : vector<1x1x16xf32>
    %107 = arith.addf %104, %106 : vector<1x1x16xf32>
    %c0_16 = arith.constant 0 : index
    %c15 = arith.constant 15 : index
    %c0_17 = arith.constant 0 : index
    %108 = vector.load %arg4[%c0_16, %c15, %c0_17] : memref<1x16x16xf32, #tpu.memory_space<vmem>>, vector<1x1x16xf32>
    tpu.vector_store %arg4[%c0_16, %c15, %c0_17], %107 {strides = array<i32>} : memref<1x16x16xf32, #tpu.memory_space<vmem>>, vector<1x1x16xf32>,
    %109 = tpu.iota {dimensions = array<i32: 1>} : vector<1x16x1xi32>
    %c0_i32_18 = arith.constant 0 : i32
    %110 = vector.broadcast %c0_i32_18 : i32 to vector<1x16x1xi32>
    %111 = arith.cmpi eq, %109, %110 : vector<1x16x1xi32>
    %c15_i32_19 = arith.constant 15 : i32
    %112 = vector.broadcast %c15_i32_19 : i32 to vector<1x16x1xi32>
    %113 = arith.cmpi eq, %109, %112 : vector<1x16x1xi32>
    %114 = arith.ori %111, %113 : vector<1x16x1xi1>
    %cst_20 = arith.constant 1.000000e+00 : f32
    %cst_21 = arith.constant 5.000000e-01 : f32
    %115 = vector.broadcast %cst_20 : f32 to vector<1x16x1xf32>
    %116 = vector.broadcast %cst_21 : f32 to vector<1x16x1xf32>
    %117 = arith.select %114, %115, %116 : vector<1x16x1xi1>, vector<1x16x1xf32>
    %118 = vector.extract_strided_slice %0 {offsets = [0, 0, 0], sizes = [1, 16, 1], strides = [1, 1, 1]} : vector<1x16x16xf32> to vector<1x16x1xf32>
    %119 = vector.extract_strided_slice %1 {offsets = [0, 0, 0], sizes = [1, 16, 1], strides = [1, 1, 1]} : vector<1x16x16xf32> to vector<1x16x1xf32>
    %120 = vector.extract_strided_slice %2 {offsets = [0, 0, 0], sizes = [1, 16, 1], strides = [1, 1, 1]} : vector<1x16x16xf32> to vector<1x16x1xf32>
    %121 = vector.extract_strided_slice %0 {offsets = [0, 0, 1], sizes = [1, 16, 1], strides = [1, 1, 1]} : vector<1x16x16xf32> to vector<1x16x1xf32>
    %122 = vector.extract_strided_slice %1 {offsets = [0, 0, 1], sizes = [1, 16, 1], strides = [1, 1, 1]} : vector<1x16x16xf32> to vector<1x16x1xf32>
    %123 = arith.subf %121, %118 : vector<1x16x1xf32>
    %124 = arith.subf %122, %119 : vector<1x16x1xf32>
    %125 = vector.extract_strided_slice %118 {offsets = [0, 1, 0], sizes = [1, 15, 1], strides = [1, 1, 1]} : vector<1x16x1xf32> to vector<1x15x1xf32>
    %126 = vector.extract_strided_slice %118 {offsets = [0, 15, 0], sizes = [1, 1, 1], strides = [1, 1, 1]} : vector<1x16x1xf32> to vector<1x1x1xf32>
    %127 = tpu.concatenate %125, %126 in 1 : vector<1x15x1xf32>, vector<1x1x1xf32> -> vector<1x16x1xf32>
    %128 = vector.extract_strided_slice %118 {offsets = [0, 0, 0], sizes = [1, 1, 1], strides = [1, 1, 1]} : vector<1x16x1xf32> to vector<1x1x1xf32>
    %129 = vector.extract_strided_slice %118 {offsets = [0, 0, 0], sizes = [1, 15, 1], strides = [1, 1, 1]} : vector<1x16x1xf32> to vector<1x15x1xf32>
    %130 = tpu.concatenate %128, %129 in 1 : vector<1x1x1xf32>, vector<1x15x1xf32> -> vector<1x16x1xf32>
    %131 = arith.subf %127, %130 : vector<1x16x1xf32>
    %132 = arith.mulf %131, %117 : vector<1x16x1xf32>
    %133 = vector.extract_strided_slice %120 {offsets = [0, 1, 0], sizes = [1, 15, 1], strides = [1, 1, 1]} : vector<1x16x1xf32> to vector<1x15x1xf32>
    %134 = vector.extract_strided_slice %120 {offsets = [0, 15, 0], sizes = [1, 1, 1], strides = [1, 1, 1]} : vector<1x16x1xf32> to vector<1x1x1xf32>
    %135 = tpu.concatenate %133, %134 in 1 : vector<1x15x1xf32>, vector<1x1x1xf32> -> vector<1x16x1xf32>
    %136 = vector.extract_strided_slice %120 {offsets = [0, 0, 0], sizes = [1, 1, 1], strides = [1, 1, 1]} : vector<1x16x1xf32> to vector<1x1x1xf32>
    %137 = vector.extract_strided_slice %120 {offsets = [0, 0, 0], sizes = [1, 15, 1], strides = [1, 1, 1]} : vector<1x16x1xf32> to vector<1x15x1xf32>
    %138 = tpu.concatenate %136, %137 in 1 : vector<1x1x1xf32>, vector<1x15x1xf32> -> vector<1x16x1xf32>
    %139 = arith.subf %135, %138 : vector<1x16x1xf32>
    %140 = arith.mulf %139, %117 : vector<1x16x1xf32>
    %141 = arith.mulf %119, %123 : vector<1x16x1xf32>
    %142 = arith.mulf %120, %132 : vector<1x16x1xf32>
    %143 = arith.addf %141, %142 : vector<1x16x1xf32>
    %144 = arith.addf %140, %124 : vector<1x16x1xf32>
    %145 = arith.mulf %118, %144 : vector<1x16x1xf32>
    %146 = arith.addf %143, %145 : vector<1x16x1xf32>
    %c0_22 = arith.constant 0 : index
    %c0_23 = arith.constant 0 : index
    %c0_24 = arith.constant 0 : index
    %147 = vector.load %arg4[%c0_22, %c0_23, %c0_24] : memref<1x16x16xf32, #tpu.memory_space<vmem>>, vector<1x16x1xf32>
    tpu.vector_store %arg4[%c0_22, %c0_23, %c0_24], %146 {strides = array<i32>} : memref<1x16x16xf32, #tpu.memory_space<vmem>>, vector<1x16x1xf32>,
    %148 = vector.extract_strided_slice %0 {offsets = [0, 0, 15], sizes = [1, 16, 1], strides = [1, 1, 1]} : vector<1x16x16xf32> to vector<1x16x1xf32>
    %149 = vector.extract_strided_slice %1 {offsets = [0, 0, 15], sizes = [1, 16, 1], strides = [1, 1, 1]} : vector<1x16x16xf32> to vector<1x16x1xf32>
    %150 = vector.extract_strided_slice %2 {offsets = [0, 0, 15], sizes = [1, 16, 1], strides = [1, 1, 1]} : vector<1x16x16xf32> to vector<1x16x1xf32>
    %151 = vector.extract_strided_slice %0 {offsets = [0, 0, 14], sizes = [1, 16, 1], strides = [1, 1, 1]} : vector<1x16x16xf32> to vector<1x16x1xf32>
    %152 = vector.extract_strided_slice %1 {offsets = [0, 0, 14], sizes = [1, 16, 1], strides = [1, 1, 1]} : vector<1x16x16xf32> to vector<1x16x1xf32>
    %153 = arith.subf %148, %151 : vector<1x16x1xf32>
    %154 = arith.subf %149, %152 : vector<1x16x1xf32>
    %155 = vector.extract_strided_slice %148 {offsets = [0, 1, 0], sizes = [1, 15, 1], strides = [1, 1, 1]} : vector<1x16x1xf32> to vector<1x15x1xf32>
    %156 = vector.extract_strided_slice %148 {offsets = [0, 15, 0], sizes = [1, 1, 1], strides = [1, 1, 1]} : vector<1x16x1xf32> to vector<1x1x1xf32>
    %157 = tpu.concatenate %155, %156 in 1 : vector<1x15x1xf32>, vector<1x1x1xf32> -> vector<1x16x1xf32>
    %158 = vector.extract_strided_slice %148 {offsets = [0, 0, 0], sizes = [1, 1, 1], strides = [1, 1, 1]} : vector<1x16x1xf32> to vector<1x1x1xf32>
    %159 = vector.extract_strided_slice %148 {offsets = [0, 0, 0], sizes = [1, 15, 1], strides = [1, 1, 1]} : vector<1x16x1xf32> to vector<1x15x1xf32>
    %160 = tpu.concatenate %158, %159 in 1 : vector<1x1x1xf32>, vector<1x15x1xf32> -> vector<1x16x1xf32>
    %161 = arith.subf %157, %160 : vector<1x16x1xf32>
    %162 = arith.mulf %161, %117 : vector<1x16x1xf32>
    %163 = vector.extract_strided_slice %150 {offsets = [0, 1, 0], sizes = [1, 15, 1], strides = [1, 1, 1]} : vector<1x16x1xf32> to vector<1x15x1xf32>
    %164 = vector.extract_strided_slice %150 {offsets = [0, 15, 0], sizes = [1, 1, 1], strides = [1, 1, 1]} : vector<1x16x1xf32> to vector<1x1x1xf32>
    %165 = tpu.concatenate %163, %164 in 1 : vector<1x15x1xf32>, vector<1x1x1xf32> -> vector<1x16x1xf32>
    %166 = vector.extract_strided_slice %150 {offsets = [0, 0, 0], sizes = [1, 1, 1], strides = [1, 1, 1]} : vector<1x16x1xf32> to vector<1x1x1xf32>
    %167 = vector.extract_strided_slice %150 {offsets = [0, 0, 0], sizes = [1, 15, 1], strides = [1, 1, 1]} : vector<1x16x1xf32> to vector<1x15x1xf32>
    %168 = tpu.concatenate %166, %167 in 1 : vector<1x1x1xf32>, vector<1x15x1xf32> -> vector<1x16x1xf32>
    %169 = arith.subf %165, %168 : vector<1x16x1xf32>
    %170 = arith.mulf %169, %117 : vector<1x16x1xf32>
    %171 = arith.mulf %149, %153 : vector<1x16x1xf32>
    %172 = arith.mulf %150, %162 : vector<1x16x1xf32>
    %173 = arith.addf %171, %172 : vector<1x16x1xf32>
    %174 = arith.addf %170, %154 : vector<1x16x1xf32>
    %175 = arith.mulf %148, %174 : vector<1x16x1xf32>
    %176 = arith.addf %173, %175 : vector<1x16x1xf32>
    %c0_25 = arith.constant 0 : index
    %c0_26 = arith.constant 0 : index
    %c15_27 = arith.constant 15 : index
    %177 = vector.load %arg4[%c0_25, %c0_26, %c15_27] : memref<1x16x16xf32, #tpu.memory_space<vmem>>, vector<1x16x1xf32>
    tpu.vector_store %arg4[%c0_25, %c0_26, %c15_27], %176 {strides = array<i32>} : memref<1x16x16xf32, #tpu.memory_space<vmem>>, vector<1x16x1xf32>,
    return
  }
  func.func @transform_0(%arg0: i32) -> (i32, i32, i32) {
    %c0_i32 = arith.constant 0 : i32
    %c0_i32_0 = arith.constant 0 : i32
    %c0_i32_1 = arith.constant 0 : i32
    return %arg0, %c0_i32, %c0_i32_0 : i32, i32, i32
  }
  func.func @transform_1(%arg0: i32) -> (i32, i32, i32) {
    %c0_i32 = arith.constant 0 : i32
    %c0_i32_0 = arith.constant 0 : i32
    %c0_i32_1 = arith.constant 0 : i32
    return %arg0, %c0_i32, %c0_i32_0 : i32, i32, i32
  }
  func.func @transform_2(%arg0: i32) -> (i32, i32, i32) {
    %c0_i32 = arith.constant 0 : i32
    %c0_i32_0 = arith.constant 0 : i32
    %c0_i32_1 = arith.constant 0 : i32
    return %arg0, %c0_i32, %c0_i32_0 : i32, i32, i32
  }
  func.func @transform_3(%arg0: i32) -> (i32, i32, i32) {
    %c0_i32 = arith.constant 0 : i32
    %c0_i32_0 = arith.constant 0 : i32
    %c0_i32_1 = arith.constant 0 : i32
    return %arg0, %c0_i32, %c0_i32_0 : i32, i32, i32
  }
}

</mosaic_0001>

<llo_original>
// kernel: tpu_custom_call.1
$region0: #{tpu_custom_call.1}
  #allocation0 [shape = 'u32[]', space=smem, size = 0x4, offset = 0x4, fixed_abs, tag = 'smem constant byte address 0x4 - core index']
  #allocation1 [shape = 'u32[144,128]{1,0:T(1,128)}', space=vmem, size = 0x12000, scoped, tag = 'internal scratch']
  %s0 = inlined_call_operand.hbm [shape: f32[2,16,16], index: 0, kind: input, shape index: {}]
  %s1 = inlined_call_operand.hbm [shape: f32[2,16,16], index: 1, kind: input, shape index: {}]
  %s2 = inlined_call_operand.hbm [shape: f32[2,16,16], index: 2, kind: input, shape index: {}]
  %s3 = inlined_call_operand.hbm [shape: f32[2,16,16], index: 3, kind: output, shape index: {}]
  %s4 = sld [smem:[#allocation0]]
  $region57: #{tpu_custom_call.1} parent=0
    _
  %s6 = ssub.s32 1, %s4
  %s7 = scalar_select 0, %s6, %s4
  $region1: #{tpu_custom_call.1} parent=0
    #allocation2 [shape = 'u8[16384]{0}', space=vmem, size = 0x4000, scoped, tag = 'input window, operand 0']
    #allocation3 [shape = 's32[2]{0}', space=sflag, size = 0x8, scoped, tag = 'scoped memory for tpu_custom_call.1']
    #allocation4 [shape = 's32[2]{0}', space=sflag, size = 0x8, scoped, tag = 'scoped memory for tpu_custom_call.1']
    #allocation5 [shape = 'u8[16384]{0}', space=vmem, size = 0x4000, scoped, tag = 'input window, operand 1']
    #allocation6 [shape = 's32[2]{0}', space=sflag, size = 0x8, scoped, tag = 'scoped memory for tpu_custom_call.1']
    #allocation7 [shape = 'u8[16384]{0}', space=vmem, size = 0x4000, scoped, tag = 'input window, operand 2']
    #allocation8 [shape = 'u8[16384]{0}', space=vmem, size = 0x4000, scoped, tag = 'output window, operand 0']
    %8 = vsyncpa [#allocation3], 0
    %s9 = scalar_lea.sflag [#allocation3], 1
    %10 = vsyncpa %s9, 0
    %11 = vsyncpa [#allocation6], 0
    %s12 = scalar_lea.sflag [#allocation6], 1
    %13 = vsyncpa %s12, 0
    %14 = vsyncpa [#allocation4], 0
    %s15 = scalar_lea.sflag [#allocation4], 1
    %16 = vsyncpa %s15, 0
    loop: start=0, step=1, limit=4
    $region2: #{tpu_custom_call.1} parent=1 // loop_pre_header
      _
    $region3: #{tpu_custom_call.1} parent=1 // loop_header
      %s18 = sphi 0, %s22
      %p19 = scmp.ge.s32.totalorder %s18, 4
      %s28 = sphi 0, %s30
      %s31 = sphi 0, %s28
      %s32 = sphi 0, %s31
      %s48 = sphi 0, %s32
      %s54 = sphi 0, %s56
      %s57 = sphi 0, %s54
      %s58 = sphi 0, %s57
      %s74 = sphi 0, %s58
      %s80 = sphi 0, %s82
      %s83 = sphi 0, %s80
      %s84 = sphi 0, %s83
      %s100 = sphi 0, %s84
      %s106 = sphi 0, %s108
      %s109 = sphi 0, %s106
      %s110 = sphi 0, %s109
      %s126 = sphi 0, %s110
    $region4: #{tpu_custom_call.1} parent=1 // loop_header_branch
      %21 = sbr.rel (%p19) target = $region8
    $region5: #{tpu_custom_call.1} parent=1 // loop_body
      %s23 = ssub.s32 %s18, 1
      %s24 = ssub.s32 %s18, 2
      %s25 = sadd.s32 %s18, 1
      %s26 = ssub.s32 %s18, %s25
      %p27 = scmp.eq.s32.totalorder %s26, 0
      %s29 = sadd.s32 %s28, 1
      %s30 = scalar_select %p27, %s28, %s29
      %p33 = pneg %p27
      %p34 = scmp.eq.s32.totalorder %s18, 1
      %p35 = por %p33, %p34
      %p36 = scmp.ne.s32.totalorder %s28, %s31
      %p37 = scmp.eq.s32.totalorder %s18, 0
      %p38 = por %p36, %p37
      %p39 = scmp.ne.s32.totalorder %s28, %s31
      %p40 = scmp.eq.s32.totalorder %s23, 1
      %p41 = por %p39, %p40
      %p42 = scmp.ne.s32.totalorder %s31, %s32
      %p43 = scmp.eq.s32.totalorder %s23, 0
      %p44 = por %p42, %p43
      %p45 = scmp.ne.s32.totalorder %s31, %s32
      %p46 = scmp.eq.s32.totalorder %s24, 1
      %p47 = por %p45, %p46
      %p49 = scmp.ne.s32.totalorder %s32, %s48
      %p50 = scmp.eq.s32.totalorder %s24, 0
      %p51 = por %p49, %p50
      %s52 = ssub.s32 %s18, %s25
      %p53 = scmp.eq.s32.totalorder %s52, 0
      %s55 = sadd.s32 %s54, 1
      %s56 = scalar_select %p53, %s54, %s55
      %p59 = pneg %p53
      %p60 = scmp.eq.s32.totalorder %s18, 1
      %p61 = por %p59, %p60
      %p62 = scmp.ne.s32.totalorder %s54, %s57
      %p63 = scmp.eq.s32.totalorder %s18, 0
      %p64 = por %p62, %p63
      %p65 = scmp.ne.s32.totalorder %s54, %s57
      %p66 = scmp.eq.s32.totalorder %s23, 1
      %p67 = por %p65, %p66
      %p68 = scmp.ne.s32.totalorder %s57, %s58
      %p69 = scmp.eq.s32.totalorder %s23, 0
      %p70 = por %p68, %p69
      %p71 = scmp.ne.s32.totalorder %s57, %s58
      %p72 = scmp.eq.s32.totalorder %s24, 1
      %p73 = por %p71, %p72
      %p75 = scmp.ne.s32.totalorder %s58, %s74
      %p76 = scmp.eq.s32.totalorder %s24, 0
      %p77 = por %p75, %p76
      %s78 = ssub.s32 %s18, %s25
      %p79 = scmp.eq.s32.totalorder %s78, 0
      %s81 = sadd.s32 %s80, 1
      %s82 = scalar_select %p79, %s80, %s81
      %p85 = pneg %p79
      %p86 = scmp.eq.s32.totalorder %s18, 1
      %p87 = por %p85, %p86
      %p88 = scmp.ne.s32.totalorder %s80, %s83
      %p89 = scmp.eq.s32.totalorder %s18, 0
      %p90 = por %p88, %p89
      %p91 = scmp.ne.s32.totalorder %s80, %s83
      %p92 = scmp.eq.s32.totalorder %s23, 1
      %p93 = por %p91, %p92
      %p94 = scmp.ne.s32.totalorder %s83, %s84
      %p95 = scmp.eq.s32.totalorder %s23, 0
      %p96 = por %p94, %p95
      %p97 = scmp.ne.s32.totalorder %s83, %s84
      %p98 = scmp.eq.s32.totalorder %s24, 1
      %p99 = por %p97, %p98
      %p101 = scmp.ne.s32.totalorder %s84, %s100
      %p102 = scmp.eq.s32.totalorder %s24, 0
      %p103 = por %p101, %p102
      %s104 = ssub.s32 %s18, %s25
      %p105 = scmp.eq.s32.totalorder %s104, 0
      %s107 = sadd.s32 %s106, 1
      %s108 = scalar_select %p105, %s106, %s107
      %p111 = pneg %p105
      %p112 = scmp.eq.s32.totalorder %s18, 1
      %p113 = por %p111, %p112
      %p114 = scmp.ne.s32.totalorder %s106, %s109
      %p115 = scmp.eq.s32.totalorder %s18, 0
      %p116 = por %p114, %p115
      %p117 = scmp.ne.s32.totalorder %s106, %s109
      %p118 = scmp.eq.s32.totalorder %s23, 1
      %p119 = por %p117, %p118
      %p120 = scmp.ne.s32.totalorder %s109, %s110
      %p121 = scmp.eq.s32.totalorder %s23, 0
      %p122 = por %p120, %p121
      %p123 = scmp.ne.s32.totalorder %s109, %s110
      %p124 = scmp.eq.s32.totalorder %s24, 1
      %p125 = por %p123, %p124
      %p127 = scmp.ne.s32.totalorder %s110, %s126
      %p128 = scmp.eq.s32.totalorder %s24, 0
      %p129 = por %p127, %p128
      %p130 = scmp.le.s32.totalorder 1, %s18
      %p131 = scmp.lt.s32.totalorder %s18, 3
      %p132 = pnand %p130, %p131
      %p133 = pneg %p132
      // Predicated region
      $region9: #{tpu_custom_call.1} parent=5 // pred_check
        _
      $region10: #{tpu_custom_call.1} parent=5 // pred_check_branch
        %135 = sbr.rel (%p132) target = $region12
      $region11: #{tpu_custom_call.1} parent=5 // pred_region
        %s136 = ssub.s32 %s18, 1
      $region12: #{tpu_custom_call.1} parent=5 // pred_fallthru
        _
      %p137 = scmp.lt.s32.totalorder %s18, 2
      // Predicated region
      $region13: #{tpu_custom_call.1} parent=5 // pred_check
        %p138 = pneg %p137
      $region14: #{tpu_custom_call.1} parent=5 // pred_check_branch
        %140 = sbr.rel (%p138) target = $region16
      $region15: #{tpu_custom_call.1} parent=5 // pred_region
        // Predicated region
        $region17: #{tpu_custom_call.1} parent=15 // pred_check
          %p141 = pneg %p38
        $region18: #{tpu_custom_call.1} parent=15 // pred_check_branch
          %143 = sbr.rel (%p141) target = $region20
        $region19: #{tpu_custom_call.1} parent=15 // pred_region
          %s144 = sand.u32 %s28, 1
          %s145 = scalar_lea.sflag [#allocation3], %s144
          %s146 = sand.u32 %s28, 1
          %s147 = smul.addr %s146, 16
          %s148 = scalar_lea.vmem [#allocation2], %s147
          %s150 = ssub.s32 256, 256
          %151 = vsyncadd %s145, %s150
          %s152 = smul.addr %s18, 2
          %s153 = smul.addr %s152, 128
          %s154 = scalar_lea.hbm %s0, %s153
          %s155 = sshll.u32 %s148, 4
          %s156 = int_to_ptr.vmem [resolvable:$true] %s155
          %161 = dma.hbm_to_vmem [thread:$0]  %s154, 256, %s156, %s145, 128, 128, 8
        $region20: #{tpu_custom_call.1} parent=15 // pred_fallthru
          _
        // Predicated region
        $region21: #{tpu_custom_call.1} parent=15 // pred_check
          %p162 = pneg %p64
        $region22: #{tpu_custom_call.1} parent=15 // pred_check_branch
          %164 = sbr.rel (%p162) target = $region24
        $region23: #{tpu_custom_call.1} parent=15 // pred_region
          %s165 = sand.u32 %s18, 1
          %s166 = scalar_lea.sflag [#allocation6], %s165
          %s167 = sand.u32 %s54, 1
          %s168 = smul.addr %s167, 16
          %s169 = scalar_lea.vmem [#allocation5], %s168
          %s171 = ssub.s32 256, 256
          %172 = vsyncadd %s166, %s171
          %s173 = smul.addr %s18, 2
          %s174 = smul.addr %s173, 128
          %s175 = scalar_lea.hbm %s1, %s174
          %s176 = sshll.u32 %s169, 4
          %s177 = int_to_ptr.vmem [resolvable:$true] %s176
          %182 = dma.hbm_to_vmem [thread:$0]  %s175, 256, %s177, %s166, 128, 128, 8
        $region24: #{tpu_custom_call.1} parent=15 // pred_fallthru
          _
        // Predicated region
        $region25: #{tpu_custom_call.1} parent=15 // pred_check
          %p183 = pneg %p90
        $region26: #{tpu_custom_call.1} parent=15 // pred_check_branch
          %185 = sbr.rel (%p183) target = $region28
        $region27: #{tpu_custom_call.1} parent=15 // pred_region
          %s186 = sand.u32 %s18, 1
          %s187 = scalar_lea.sflag [#allocation6], %s186
          %s188 = sand.u32 %s80, 1
          %s189 = smul.addr %s188, 16
          %s190 = scalar_lea.vmem [#allocation7], %s189
          %s192 = ssub.s32 256, 256
          %193 = vsyncadd %s187, %s192
          %s194 = smul.addr %s18, 2
          %s195 = smul.addr %s194, 128
          %s196 = scalar_lea.hbm %s2, %s195
          %s197 = sshll.u32 %s190, 4
          %s198 = int_to_ptr.vmem [resolvable:$true] %s197
          %203 = dma.hbm_to_vmem [thread:$0]  %s196, 256, %s198, %s187, 128, 128, 8
        $region28: #{tpu_custom_call.1} parent=15 // pred_fallthru
          _
      $region16: #{tpu_custom_call.1} parent=5 // pred_fallthru
        _
      %p204 = scmp.le.s32.totalorder 1, %s18
      %p205 = scmp.lt.s32.totalorder %s18, 3
      %p206 = pnand %p204, %p205
      %p207 = pneg %p206
      // Predicated region
      $region29: #{tpu_custom_call.1} parent=5 // pred_check
        _
      $region30: #{tpu_custom_call.1} parent=5 // pred_check_branch
        %209 = sbr.rel (%p206) target = $region32
      $region31: #{tpu_custom_call.1} parent=5 // pred_region
        %s210 = ssub.s32 %s18, 1
        %s211 = sand.u32 %s31, 1
        %s212 = scalar_lea.sflag [#allocation3], %s211
        %s213 = sand.u32 %s31, 1
        %s214 = smul.addr %s213, 16
        %s215 = scalar_lea.vmem [#allocation2], %s214
        // Predicated region
        $region33: #{tpu_custom_call.1} parent=31 // pred_check
          %p216 = pneg %p44
        $region34: #{tpu_custom_call.1} parent=31 // pred_check_branch
          %218 = sbr.rel (%p216) target = $region36
        $region35: #{tpu_custom_call.1} parent=31 // pred_region
          %219 = dma.done %s212, 256
        $region36: #{tpu_custom_call.1} parent=31 // pred_fallthru
          _
        %s220 = sand.u32 %s23, 1
        %s221 = scalar_lea.sflag [#allocation6], %s220
        %s222 = sand.u32 %s57, 1
        %s223 = smul.addr %s222, 16
        %s224 = scalar_lea.vmem [#allocation5], %s223
        // Predicated region
        $region37: #{tpu_custom_call.1} parent=31 // pred_check
          %p225 = pneg %p70
        $region38: #{tpu_custom_call.1} parent=31 // pred_check_branch
          %227 = sbr.rel (%p225) target = $region40
        $region39: #{tpu_custom_call.1} parent=31 // pred_region
          %228 = dma.done %s221, 256
        $region40: #{tpu_custom_call.1} parent=31 // pred_fallthru
          _
        %s229 = sand.u32 %s23, 1
        %s230 = scalar_lea.sflag [#allocation6], %s229
        %s231 = sand.u32 %s83, 1
        %s232 = smul.addr %s231, 16
        %s233 = scalar_lea.vmem [#allocation7], %s232
        // Predicated region
        $region41: #{tpu_custom_call.1} parent=31 // pred_check
          %p234 = pneg %p96
        $region42: #{tpu_custom_call.1} parent=31 // pred_check_branch
          %236 = sbr.rel (%p234) target = $region44
        $region43: #{tpu_custom_call.1} parent=31 // pred_region
          %237 = dma.done %s230, 256
        $region44: #{tpu_custom_call.1} parent=31 // pred_fallthru
          _
        %s238 = sand.u32 %s31, 1
        %s239 = scalar_lea.sflag [#allocation3], %s238
        %s240 = sand.u32 %s31, 1
        %s241 = smul.addr %s240, 16
        %s242 = scalar_lea.vmem [#allocation2], %s241
        %p243 = pneg %p44
        %p244 = pneg %p41
        %s245 = sand.u32 %s23, 1
        %s246 = scalar_lea.sflag [#allocation6], %s245
        %s247 = sand.u32 %s57, 1
        %s248 = smul.addr %s247, 16
        %s249 = scalar_lea.vmem [#allocation5], %s248
        %p250 = pneg %p70
        %p251 = pneg %p67
        %s252 = sand.u32 %s23, 1
        %s253 = scalar_lea.sflag [#allocation6], %s252
        %s254 = sand.u32 %s83, 1
        %s255 = smul.addr %s254, 16
        %s256 = scalar_lea.vmem [#allocation7], %s255
        %p257 = pneg %p96
        %p258 = pneg %p93
        %p259 = pneg %p122
        %p260 = pneg %p119
        %s261 = sand.u32 %s109, 1
        %s262 = scalar_lea.sflag [#allocation4], %s261
        %s263 = sand.u32 %s109, 1
        %s264 = smul.addr %s263, 16
        %s265 = scalar_lea.vmem [#allocation8], %s264
        %v266 = vld [vmem:[%s215] sm:$0xff]
        %v267 = vld [vmem:[%s215 + $0x8] sm:$0xff]
        %v268 = vld [vmem:[%s224] sm:$0xff]
        %v269 = vld [vmem:[%s224 + $0x8] sm:$0xff]
        %v270 = vld [vmem:[%s233] sm:$0xff]
        %v271 = vld [vmem:[%s233 + $0x8] sm:$0xff]
        %274 = vrot.lane.b32.xlu0 %v266, 127
        %v275 = vpop.permute.xlu0 %274
        %276 = vrot.lane.b32.xlu0 %v267, 127
        %v277 = vpop.permute.xlu0 %276
        %vm280 = vcmask 121856
        %v281 = vsel %vm280, %v275, %v266
        %v282 = vsel %vm280, %v277, %v267
        %283 = vrot.lane.b32.xlu0 %v266, 1
        %v284 = vpop.permute.xlu0 %283
        %285 = vrot.lane.b32.xlu0 %v267, 1
        %v286 = vpop.permute.xlu0 %285
        %vm289 = vcmask 7168
        %v290 = vsel %vm289, %v266, %v284
        %v291 = vsel %vm289, %v267, %v286
        %v292 = vsub.f32 %v281, %v290
        %v293 = vsub.f32 %v282, %v291
        %v294 = vmul.f32 %v268, %v292
        %v295 = vmul.f32 %v269, %v293
        %vm296 = vcmask 1046528
        %v297 = vrot.slane %v266, 1
        %v298 = vrot.slane %v267, 1
        %v299 = vsel %vm296, %v297, %v298
        %v302 = vsel %vm296, %v298, %v267
        %vm303 = vcmask 1040384
        %v304 = vrot.slane %v266, 7
        %v305 = vrot.slane %v267, 7
        %v306 = vsel %vm303, %v304, %v305
        %v309 = vsel %vm303, %v266, %v304
        %v310 = vsub.f32 %v299, %v309
        %v311 = vsub.f32 %v302, %v306
        %v312 = vmul.f32 %v270, %v310
        %v313 = vmul.f32 %v271, %v311
        %v314 = vadd.f32 %v294, %v312
        %v315 = vadd.f32 %v295, %v313
        %v318 = vrot.slane %v270, 1
        %v319 = vrot.slane %v271, 1
        %v320 = vsel %vm296, %v318, %v319
        %v323 = vsel %vm296, %v319, %v271
        %v324 = vrot.slane %v270, 7
        %v325 = vrot.slane %v271, 7
        %v326 = vsel %vm303, %v324, %v325
        %v329 = vsel %vm303, %v270, %v324
        %v330 = vsub.f32 %v320, %v329
        %v331 = vsub.f32 %v323, %v326
        %334 = vrot.lane.b32.xlu0 %v268, 127
        %v335 = vpop.permute.xlu0 %334
        %336 = vrot.lane.b32.xlu0 %v269, 127
        %v337 = vpop.permute.xlu0 %336
        %v340 = vsel %vm280, %v335, %v268
        %v341 = vsel %vm280, %v337, %v269
        %342 = vrot.lane.b32.xlu0 %v268, 1
        %v343 = vpop.permute.xlu0 %342
        %344 = vrot.lane.b32.xlu0 %v269, 1
        %v345 = vpop.permute.xlu0 %344
        %v348 = vsel %vm289, %v268, %v343
        %v349 = vsel %vm289, %v269, %v345
        %v350 = vsub.f32 %v340, %v348
        %v351 = vsub.f32 %v341, %v349
        %v352 = vadd.f32 %v330, %v350
        %v353 = vadd.f32 %v331, %v351
        %v354 = vmul.f32 %v266, %v352
        %v355 = vmul.f32 %v267, %v353
        %v356 = vadd.f32 %v314, %v354
        %v357 = vadd.f32 %v315, %v355
        %v358 = vmul.f32 %v356, 0.5
        %v359 = vmul.f32 %v357, 0.5
        %vm360 = vcmask 130048
        %361 = vst.msk [vmem:[%s265] sm:$0xff] %vm360, %v358
        %362 = vst.msk [vmem:[%s265 + $0x8] sm:$0xff] %vm360, %v359
        %v363 = vlaneseq
        %v364 = vand.u32 %v363, 127
        %vm365 = vcmp.eq.s32.totalorder %v364, 0
        %vm366 = vcmp.eq.s32.totalorder %v364, 15
        %vm367 = vmor %vm365, %vm366
        %v368 = vsel %vm367, 1.0, 0.5
        %v369 = vsub.f32 %v266, %v304
        %v370 = vsub.f32 %v270, %v324
        %v371 = vmul.f32 %v292, %v368
        %v372 = vmul.f32 %v350, %v368
        %v373 = vmul.f32 %v268, %v371
        %v375 = vrot.slane %v369, 1
        %v377 = vmul.f32 %v270, %v375
        %v378 = vadd.f32 %v373, %v377
        %v380 = vrot.slane %v372, 7
        %v382 = vadd.f32 %v370, %v380
        %v384 = vrot.slane %v382, 1
        %v386 = vmul.f32 %v266, %v384
        %v387 = vadd.f32 %v378, %v386
        %vm388 = vcmask 122880
        %389 = vst.msk [vmem:[%s265] sm:$0x1] %vm388, %v387
        %v391 = vsub.f32 %v267, %v305
        %v393 = vsub.f32 %v271, %v325
        %v394 = vmul.f32 %v293, %v368
        %v395 = vmul.f32 %v351, %v368
        %v396 = vmul.f32 %v269, %v394
        %v397 = vmul.f32 %v271, %v391
        %v398 = vadd.f32 %v396, %v397
        %v399 = vadd.f32 %v393, %v395
        %v400 = vmul.f32 %v267, %v399
        %v401 = vadd.f32 %v398, %v400
        %vm402 = vcmask 130055
        %403 = vst.msk [vmem:[%s265 + $0x8] sm:$0x80] %vm402, %v401
        %v404 = vlaneseq
        %v405 = vshrl.u32 %v404, 7
        %v406 = vadd.s32 %v405, 8
        %vm407 = vcmp.eq.s32.totalorder %v405, 0
        %vm408 = vcmp.eq.s32.totalorder %v406, 0
        %vm409 = vcmp.eq.s32.totalorder %v405, 15
        %vm410 = vcmp.eq.s32.totalorder %v406, 15
        %vm411 = vmor %vm407, %vm409
        %vm412 = vmor %vm408, %vm410
        %v413 = vsel %vm411, 1.0, 0.5
        %v414 = vsel %vm412, 1.0, 0.5
        %v415 = vsub.f32 %v266, %v284
        %v416 = vsub.f32 %v267, %v286
        %v417 = vsub.f32 %v268, %v343
        %v418 = vsub.f32 %v269, %v345
        %v419 = vmul.f32 %v310, %v413
        %v420 = vmul.f32 %v311, %v414
        %v421 = vmul.f32 %v330, %v413
        %v422 = vmul.f32 %v331, %v414
        %425 = vrot.lane.b32.xlu0 %v415, 127
        %v426 = vpop.permute.xlu0 %425
        %427 = vrot.lane.b32.xlu0 %v416, 127
        %v428 = vpop.permute.xlu0 %427
        %v431 = vmul.f32 %v268, %v426
        %v432 = vmul.f32 %v269, %v428
        %v433 = vmul.f32 %v270, %v419
        %v434 = vmul.f32 %v271, %v420
        %v435 = vadd.f32 %v431, %v433
        %v436 = vadd.f32 %v432, %v434
        %439 = vrot.lane.b32.xlu0 %v417, 127
        %v440 = vpop.permute.xlu0 %439
        %441 = vrot.lane.b32.xlu0 %v418, 127
        %v442 = vpop.permute.xlu0 %441
        %v445 = vadd.f32 %v421, %v440
        %v446 = vadd.f32 %v422, %v442
        %v447 = vmul.f32 %v266, %v445
        %v448 = vmul.f32 %v267, %v446
        %v449 = vadd.f32 %v435, %v447
        %v450 = vadd.f32 %v436, %v448
        %451 = vst.msk [vmem:[%s265] sm:$0xff] %vm289, %v449
        %452 = vst.msk [vmem:[%s265 + $0x8] sm:$0xff] %vm289, %v450
        %v453 = vmul.f32 %v268, %v415
        %v454 = vmul.f32 %v269, %v416
        %v455 = vadd.f32 %v453, %v433
        %v456 = vadd.f32 %v454, %v434
        %v457 = vadd.f32 %v421, %v417
        %v458 = vadd.f32 %v422, %v418
        %v459 = vmul.f32 %v266, %v457
        %v460 = vmul.f32 %v267, %v458
        %v461 = vadd.f32 %v455, %v459
        %v462 = vadd.f32 %v456, %v460
        %vm463 = vcmask 130168
        %464 = vst.msk [vmem:[%s265] sm:$0xff] %vm463, %v461
        %465 = vst.msk [vmem:[%s265 + $0x8] sm:$0xff] %vm463, %v462
        %s466 = sand.u32 %s109, 1
        %s467 = scalar_lea.sflag [#allocation4], %s466
        %s468 = sand.u32 %s109, 1
        %s469 = smul.addr %s468, 16
        %s470 = scalar_lea.vmem [#allocation8], %s469
        // Predicated region
        $region45: #{tpu_custom_call.1} parent=31 // pred_check
          %p471 = pneg %p119
        $region46: #{tpu_custom_call.1} parent=31 // pred_check_branch
          %473 = sbr.rel (%p471) target = $region48
        $region47: #{tpu_custom_call.1} parent=31 // pred_region
          %s475 = ssub.s32 256, 256
          %476 = vsyncadd %s467, %s475
          %s477 = smul.addr %s23, 2
          %s478 = smul.addr %s477, 128
          %s479 = scalar_lea.hbm %s3, %s478
          %s480 = sshll.u32 %s470, 4
          %s481 = int_to_ptr.vmem [resolvable:$true] %s480
          %486 = dma.vmem_to_hbm [thread:$0]  %s481, 256, %s479, %s467, 128, 128, 8
        $region48: #{tpu_custom_call.1} parent=31 // pred_fallthru
          _
      $region32: #{tpu_custom_call.1} parent=5 // pred_fallthru
        _
      %p487 = scmp.le.s32.totalorder 2, %s18
      // Predicated region
      $region49: #{tpu_custom_call.1} parent=5 // pred_check
        %p488 = pneg %p487
      $region50: #{tpu_custom_call.1} parent=5 // pred_check_branch
        %490 = sbr.rel (%p488) target = $region52
      $region51: #{tpu_custom_call.1} parent=5 // pred_region
        %s491 = ssub.s32 %s18, 2
        // Predicated region
        $region53: #{tpu_custom_call.1} parent=51 // pred_check
          %p492 = pneg %p125
        $region54: #{tpu_custom_call.1} parent=51 // pred_check_branch
          %494 = sbr.rel (%p492) target = $region56
        $region55: #{tpu_custom_call.1} parent=51 // pred_region
          %s495 = sand.u32 %s110, 1
          %s496 = scalar_lea.sflag [#allocation4], %s495
          %s497 = sand.u32 %s110, 1
          %s498 = smul.addr %s497, 16
          %s499 = scalar_lea.vmem [#allocation8], %s498
          %500 = dma.done %s496, 256
        $region56: #{tpu_custom_call.1} parent=51 // pred_fallthru
          _
      $region52: #{tpu_custom_call.1} parent=5 // pred_fallthru
        _
    $region6: #{tpu_custom_call.1} parent=1 // loop_footer
      %s22 = sadd.s32 1, %s18
    $region7: #{tpu_custom_call.1} parent=1 // loop_footer_branch
      %17 = sbr.rel target = $region3
    $region8: #{tpu_custom_call.1} parent=1 // loop_exit
      _
    %501 = vsyncpa [#allocation3], 1
    %s502 = scalar_lea.sflag [#allocation3], 1
    %503 = vsyncpa %s502, 1
    %504 = vsyncpa [#allocation6], 1
    %s505 = scalar_lea.sflag [#allocation6], 1
    %506 = vsyncpa %s505, 1
    %507 = vsyncpa [#allocation4], 1
    %s508 = scalar_lea.sflag [#allocation4], 1
    %509 = vsyncpa %s508, 1

</llo_original>
